<compile_context>
chip_gen: v6e
topology: v6e:2x2x1
jax: 0.10.0
libtpu: 0.0.40
codegen_flags: <defaults>
</compile_context>

<pallas_src>
import functools

import jax
import jax.numpy as jnp
from jax import lax
from jax.experimental import pallas as pl
from jax.experimental.pallas import tpu as pltpu


def _ntxent_row_block_kernel(x_rows_ref, x_all_ref, o_ref, *, temperature: float):
    inv_sqrt_t = 1.0 / float(temperature) ** 0.5

    xr = x_rows_ref[...].astype(jnp.float32)   # (TM, D) — this row block
    xa = x_all_ref[...].astype(jnp.float32)    # (B,  D) — all rows (resident)
    tm = xr.shape[0]

    # L2-normalize rows and fold in 1/sqrt(T): xn_i . xn_j == cos(i, j) / T.
    # rsqrt goes to the EUP slot; this removes the B*B outer/divide entirely.
    xr_n = xr * (lax.rsqrt(jnp.sum(xr * xr, axis=1, keepdims=True)) * inv_sqrt_t)
    xa_n = xa * (lax.rsqrt(jnp.sum(xa * xa, axis=1, keepdims=True)) * inv_sqrt_t)
    # NOTE: casting xr_n/xa_n to bf16 here would double MXU throughput but costs
    # ~1e-3 relative accuracy; kept f32 to preserve the reference tolerance.

    # (TM, B) scaled cosine similarities.  Contracting the last (lane) axis of
    # both operands feeds the MXU without materializing a transpose of x.
    sim = lax.dot_general(
        xr_n, xa_n,
        dimension_numbers=(((1,), (1,)), ((), ())),
        preferred_element_type=jnp.float32)

    est = jnp.exp(sim)                                                # (TM, B)

    # Row sums minus the diagonal term.  diag(sim) for row r is its
    # self-similarity sum(xr_n[r]^2) (== 1/T up to rounding), so no B*B iota
    # mask / compare / select is needed.
    self_sim = jnp.sum(xr_n * xr_n, axis=1, keepdims=True)            # (TM, 1)
    denom = jnp.sum(est, axis=1, keepdims=True) - jnp.exp(self_sim)   # (TM, 1)

    # Positive pair of row r is row r^1 (adjacent pair, always within the tile
    # since TM is even).  Swap adjacent sublane rows with two XLU rolls + a
    # parity select, then take the rowwise dot product.
    up = pltpu.roll(xr_n, shift=tm - 1, axis=0)   # row i <- row i+1 (mod tm)
    dn = pltpu.roll(xr_n, shift=1, axis=0)        # row i <- row i-1 (mod tm)
    parity = lax.broadcasted_iota(jnp.int32, (tm, 1), 0) % 2
    partner = jnp.where(parity == 0, up, dn)                          # (TM, D)
    pos = jnp.sum(xr_n * partner, axis=1, keepdims=True)              # (TM, 1)

    # numer = exp(pos)  =>  -log(numer / denom) = log(denom) - pos.
    # One log per row; no divide and no exp->log round trip for the numerator.
    o_ref[...] = jnp.log(denom) - pos


def _row_tile(batch_size: int) -> int:
    """Largest even, sublane-friendly row tile that divides the batch."""
    for tm in (256, 128, 64, 32, 16, 8):
        if batch_size % tm == 0:
            return tm
    return batch_size  # small / irregular even batch: a single full-batch block


def ntxent_loss(batch_tensor: jax.Array, temperature: float) -> jax.Array:
    batch, dim = batch_tensor.shape
    if batch % 2 != 0:
        raise ValueError(
            "NT-Xent loss expects an even batch size.\n"
            f"Size of the input batch: {batch}")
    x = batch_tensor.astype(jnp.float32)

    tm = _row_tile(batch)
    grid = (batch // tm,)

    # VMEM budget: double-buffered (TM, D) row block + resident (B, D) operand
    # + the (TM, B) f32 slabs (sim / est / temporaries).  Clamp the scoped limit
    # to stay inside v7x's 64 MiB physical VMEM while raising v5e's 16 MiB
    # default when needed.
    est_live_bytes = 4 * (2 * tm * dim + 2 * batch * dim + 6 * tm * batch)
    vmem_limit = int(min(max(2 * est_live_bytes, 32 * 1024 * 1024),
                         48 * 1024 * 1024))

    per_row = pl.pallas_call(
        functools.partial(_ntxent_row_block_kernel,
                          temperature=float(temperature)),
        out_shape=jax.ShapeDtypeStruct((batch, 1), jnp.float32),
        grid=grid,
        in_specs=[
            pl.BlockSpec((tm, dim), lambda i: (i, 0)),     # streamed row block
            pl.BlockSpec((batch, dim), lambda i: (0, 0)),  # resident full x
        ],
        out_specs=pl.BlockSpec((tm, 1), lambda i: (i, 0)),
        compiler_params=pltpu.CompilerParams(
            dimension_semantics=("parallel",),  # v7x: row blocks split over 2 TCs
            vmem_limit_bytes=vmem_limit),
    )(x, x)

    # Tiny epilogue (B -> scalar) stays in plain JAX so the kernel grid axis has
    # no cross-block accumulator and remains truly parallel.
    return jnp.sum(per_row) / jnp.float32(batch)


def _ntxent_reference(x: jax.Array, temperature: float) -> jax.Array:
    # Pure-JAX reference mirroring the PyTorch forward exactly.
    x = x.astype(jnp.float32)
    b = x.shape[0]
    norms = jnp.linalg.norm(x, axis=1)
    sim = (x @ x.T) / jnp.outer(norms, norms)
    est = jnp.exp(sim / temperature)
    est = est * (1.0 - jnp.eye(b, dtype=jnp.float32))
    denom = est.sum(axis=1)
    i1 = jnp.arange(0, b, 2)
    i2 = jnp.arange(1, b, 2)
    s1 = jnp.sum(-jnp.log(est[i1, i2] / denom[i1]))
    s2 = jnp.sum(-jnp.log(est[i2, i1] / denom[i2]))
    return (s1 + s2) / b


if __name__ == "__main__":
    temperature = 0.5
    # Small but hardware-aligned: D multiple of 128 (lanes), rows multiple of 8;
    # B=32 with TM=8 exercises the row-tiled grid (4 blocks).
    B, D = 32, 128
    key = jax.random.PRNGKey(0)
    x = jax.random.normal(key, (B, D), dtype=jnp.float32)

    loss = ntxent_loss(x, temperature)
    jax.block_until_ready(loss)

    ref = _ntxent_reference(x, temperature)
    assert jnp.allclose(loss, ref, rtol=1e-5, atol=1e-5), (loss, ref)
    print("KERNEL_OK")
</pallas_src>

<mosaic_0001>
module attributes {stable_mosaic.version = 11 : i64} {
  func.func @_ntxent_row_block_kernel(%arg0: i32, %arg1: memref<32x128xf32, #tpu.memory_space<vmem>>, %arg2: memref<32x128xf32, #tpu.memory_space<vmem>>, %arg3: memref<32x1xf32, #tpu.memory_space<vmem>>) attributes {dimension_semantics = [#tpu.dimension_semantics<parallel>], iteration_bounds = array<i64: 1>, scalar_prefetch = 0 : i64, scratch_operands = 0 : i64, tpu.core_type = #tpu.core_type<tc>, window_params = [{transform_indices = @transform_0, window_bounds = array<i64: 32, 128>}, {pipeline_mode = #tpu.pipeline_mode<synchronous>, transform_indices = @transform_1, window_bounds = array<i64: 32, 128>}, {transform_indices = @transform_2, window_bounds = array<i64: 32, 1>}]} {
    %c0 = arith.constant 0 : index
    %c0_0 = arith.constant 0 : index
    %0 = vector.load %arg1[%c0, %c0_0] : memref<32x128xf32, #tpu.memory_space<vmem>>, vector<32x128xf32>
    %c0_1 = arith.constant 0 : index
    %c0_2 = arith.constant 0 : index
    %1 = vector.load %arg2[%c0_1, %c0_2] : memref<32x128xf32, #tpu.memory_space<vmem>>, vector<32x128xf32>
    %2 = arith.mulf %0, %0 : vector<32x128xf32>
    %cst = arith.constant dense<0.000000e+00> : vector<32xf32>
    %3 = vector.multi_reduction <add>, %2, %cst [1] : vector<32x128xf32> to vector<32xf32>
    %4 = vector.shape_cast %3 : vector<32xf32> to vector<32x1xf32>
    %5 = math.rsqrt %4 : vector<32x1xf32>
    %cst_3 = arith.constant 1.41421354 : f32
    %6 = vector.broadcast %cst_3 : f32 to vector<32x1xf32>
    %7 = arith.mulf %5, %6 : vector<32x1xf32>
    %8 = vector.broadcast %7 : vector<32x1xf32> to vector<32x128xf32>
    %9 = arith.mulf %0, %8 : vector<32x128xf32>
    %10 = arith.mulf %1, %1 : vector<32x128xf32>
    %cst_4 = arith.constant dense<0.000000e+00> : vector<32xf32>
    %11 = vector.multi_reduction <add>, %10, %cst_4 [1] : vector<32x128xf32> to vector<32xf32>
    %12 = vector.shape_cast %11 : vector<32xf32> to vector<32x1xf32>
    %13 = math.rsqrt %12 : vector<32x1xf32>
    %cst_5 = arith.constant 1.41421354 : f32
    %14 = vector.broadcast %cst_5 : f32 to vector<32x1xf32>
    %15 = arith.mulf %13, %14 : vector<32x1xf32>
    %16 = vector.broadcast %15 : vector<32x1xf32> to vector<32x128xf32>
    %17 = arith.mulf %1, %16 : vector<32x128xf32>
    %cst_6 = arith.constant dense<0.000000e+00> : vector<32x32xf32>
    %18 = tpu.matmul %9, %17, %cst_6 {dimension_numbers = #tpu.dot_dimension_numbers<[1], [1], [0], [0], [0, 0, 1, 0], [], []>} : vector<32x128xf32>, vector<32x128xf32>, vector<32x32xf32> -> vector<32x32xf32>
    %19 = math.exp %18 : vector<32x32xf32>
    %20 = arith.mulf %9, %9 : vector<32x128xf32>
    %cst_7 = arith.constant dense<0.000000e+00> : vector<32xf32>
    %21 = vector.multi_reduction <add>, %20, %cst_7 [1] : vector<32x128xf32> to vector<32xf32>
    %22 = vector.shape_cast %21 : vector<32xf32> to vector<32x1xf32>
    %cst_8 = arith.constant dense<0.000000e+00> : vector<32xf32>
    %23 = vector.multi_reduction <add>, %19, %cst_8 [1] : vector<32x32xf32> to vector<32xf32>
    %24 = vector.shape_cast %23 : vector<32xf32> to vector<32x1xf32>
    %25 = math.exp %22 : vector<32x1xf32>
    %26 = arith.subf %24, %25 : vector<32x1xf32>
    %c31_i32 = arith.constant 31 : i32
    %27 = tpu.dynamic_rotate %9 by %c31_i32 dim 0 : vector<32x128xf32>, i32 -> vector<32x128xf32>
    %c1_i32 = arith.constant 1 : i32
    %28 = tpu.dynamic_rotate %9 by %c1_i32 dim 0 : vector<32x128xf32>, i32 -> vector<32x128xf32>
    %29 = tpu.iota {dimensions = array<i32: 0>} : vector<32x1xi32>
    %c2_i32 = arith.constant 2 : i32
    %c0_i32 = arith.constant 0 : i32
    %30 = arith.cmpi eq, %c2_i32, %c0_i32 : i32
    %c1_i32_9 = arith.constant 1 : i32
    %31 = arith.select %30, %c1_i32_9, %c2_i32 : i32
    %32 = vector.broadcast %31 : i32 to vector<32x1xi32>
    %33 = arith.remsi %29, %32 : vector<32x1xi32>
    %c0_i32_10 = arith.constant 0 : i32
    %34 = vector.broadcast %c0_i32_10 : i32 to vector<32x1xi32>
    %35 = arith.cmpi ne, %33, %34 : vector<32x1xi32>
    %c0_i32_11 = arith.constant 0 : i32
    %36 = vector.broadcast %c0_i32_11 : i32 to vector<32x1xi32>
    %37 = arith.cmpi slt, %33, %36 : vector<32x1xi32>
    %c0_i32_12 = arith.constant 0 : i32
    %38 = arith.cmpi slt, %31, %c0_i32_12 : i32
    %39 = vector.broadcast %38 : i1 to vector<32x1xi1>
    %40 = vector.broadcast %39 : vector<32x1xi1> to vector<32x1xi1>
    %41 = arith.xori %37, %40 : vector<32x1xi1>
    %42 = arith.andi %41, %35 : vector<32x1xi1>
    %43 = vector.broadcast %31 : i32 to vector<32x1xi32>
    %44 = arith.addi %33, %43 : vector<32x1xi32>
    %45 = arith.select %42, %44, %33 : vector<32x1xi1>, vector<32x1xi32>
    %c0_i32_13 = arith.constant 0 : i32
    %46 = vector.broadcast %c0_i32_13 : i32 to vector<32x1xi32>
    %47 = arith.cmpi eq, %45, %46 : vector<32x1xi32>
    %48 = vector.shape_cast %47 : vector<32x1xi1> to vector<32x1xi1>
    %49 = vector.broadcast %48 : vector<32x1xi1> to vector<32x128xi1>
    %50 = arith.select %49, %27, %28 : vector<32x128xi1>, vector<32x128xf32>
    %51 = arith.mulf %9, %50 : vector<32x128xf32>
    %cst_14 = arith.constant dense<0.000000e+00> : vector<32xf32>
    %52 = vector.multi_reduction <add>, %51, %cst_14 [1] : vector<32x128xf32> to vector<32xf32>
    %53 = vector.shape_cast %52 : vector<32xf32> to vector<32x1xf32>
    %54 = math.log %26 : vector<32x1xf32>
    %55 = arith.subf %54, %53 : vector<32x1xf32>
    %c0_15 = arith.constant 0 : index
    %c0_16 = arith.constant 0 : index
    %56 = vector.load %arg3[%c0_15, %c0_16] : memref<32x1xf32, #tpu.memory_space<vmem>>, vector<32x1xf32>
    tpu.vector_store %arg3[%c0_15, %c0_16], %55 {strides = array<i32>} : memref<32x1xf32, #tpu.memory_space<vmem>>, vector<32x1xf32>,
    return
  }
  func.func @transform_0(%arg0: i32) -> (i32, i32) {
    %c0_i32 = arith.constant 0 : i32
    %c0_i32_0 = arith.constant 0 : i32
    return %arg0, %c0_i32 : i32, i32
  }
  func.func @transform_1(%arg0: i32) -> (i32, i32) {
    %c0_i32 = arith.constant 0 : i32
    %c0_i32_0 = arith.constant 0 : i32
    %c0_i32_1 = arith.constant 0 : i32
    return %c0_i32, %c0_i32_0 : i32, i32
  }
  func.func @transform_2(%arg0: i32) -> (i32, i32) {
    %c0_i32 = arith.constant 0 : i32
    %c0_i32_0 = arith.constant 0 : i32
    return %arg0, %c0_i32 : i32, i32
  }
}

</mosaic_0001>

<llo_original>
// kernel: tpu_custom_call.1
$region0: #{tpu_custom_call.1}
  #allocation0 [shape = 'u32[]', space=smem, size = 0x4, offset = 0x4, fixed_abs, tag = 'smem constant byte address 0x4 - core index']
  #allocation1 [shape = 'u32[144,128]{1,0:T(1,128)}', space=vmem, size = 0x12000, scoped, tag = 'internal scratch']
  %s0 = inlined_call_operand.hbm [shape: f32[32,128], index: 0, kind: input, shape index: {}]
  %s1 = inlined_call_operand.hbm [shape: f32[32,128], index: 1, kind: input, shape index: {}]
  %s2 = inlined_call_operand.vmem [shape: f32[32,1], index: 2, kind: output, shape index: {}]
  %s3 = sld [smem:[#allocation0]]
  $region26: #{tpu_custom_call.1} parent=0
    _
  %s5 = ssub.s32 1, %s3
  %s6 = scalar_select 0, %s5, %s3
  $region1: #{tpu_custom_call.1} parent=0
    #allocation2 [shape = 'u8[16384]{0}', space=vmem, size = 0x4000, scoped, tag = 'input window, operand 0, single buffered']
    #allocation3 [shape = 's32[1]{0}', space=sflag, size = 0x4, scoped, tag = 'scoped memory for tpu_custom_call.1']
    #allocation4 [shape = 'u8[16384]{0}', space=vmem, size = 0x4000, scoped, tag = 'input window, operand 1, single buffered']
    #allocation5 [shape = 's32[1]{0}', space=sflag, size = 0x4, scoped, tag = 'scoped memory for tpu_custom_call.1']
    %7 = vsyncpa [#allocation3], 0
    %8 = vsyncpa [#allocation5], 0
    // Predicated region
    $region2: #{tpu_custom_call.1} parent=1 // pred_check
      _
    $region3: #{tpu_custom_call.1} parent=1 // pred_check_branch
      %10 = sbr.rel (0) target = $region5
    $region4: #{tpu_custom_call.1} parent=1 // pred_region
      %s12 = ssub.s32 512, 512
      %13 = vsyncadd [#allocation3], %s12
      %s14 = sshll.u32 [#allocation2], 4
      %s15 = int_to_ptr.vmem [resolvable:$true] %s14
      %20 = dma.hbm_to_vmem [thread:$0]  %s0, 512, %s15, [#allocation3], 128, 128, 8
    $region5: #{tpu_custom_call.1} parent=1 // pred_fallthru
      _
    // Predicated region
    $region6: #{tpu_custom_call.1} parent=1 // pred_check
      _
    $region7: #{tpu_custom_call.1} parent=1 // pred_check_branch
      %22 = sbr.rel (0) target = $region9
    $region8: #{tpu_custom_call.1} parent=1 // pred_region
      %s24 = ssub.s32 512, 512
      %25 = vsyncadd [#allocation5], %s24
      %s26 = sshll.u32 [#allocation4], 4
      %s27 = int_to_ptr.vmem [resolvable:$true] %s26
      %32 = dma.hbm_to_vmem [thread:$0]  %s1, 512, %s27, [#allocation5], 128, 128, 8
    $region9: #{tpu_custom_call.1} parent=1 // pred_fallthru
      _
    // Predicated region
    $region10: #{tpu_custom_call.1} parent=1 // pred_check
      _
    $region11: #{tpu_custom_call.1} parent=1 // pred_check_branch
      %34 = sbr.rel (0) target = $region13
    $region12: #{tpu_custom_call.1} parent=1 // pred_region
      %35 = dma.done [#allocation3], 512
    $region13: #{tpu_custom_call.1} parent=1 // pred_fallthru
      _
    // Predicated region
    $region14: #{tpu_custom_call.1} parent=1 // pred_check
      _
    $region15: #{tpu_custom_call.1} parent=1 // pred_check_branch
      %37 = sbr.rel (0) target = $region17
    $region16: #{tpu_custom_call.1} parent=1 // pred_region
      %38 = dma.done [#allocation5], 512
    $region17: #{tpu_custom_call.1} parent=1 // pred_fallthru
      _
    %v39 = vld [vmem:[#allocation2] sm:$0xff]
    %v40 = vld [vmem:[#allocation2 + $0x8] sm:$0xff]
    %v41 = vld [vmem:[#allocation2 + $0x10] sm:$0xff]
    %v42 = vld [vmem:[#allocation2 + $0x18] sm:$0xff]
    %v43 = vld [vmem:[#allocation4] sm:$0xff]
    %v44 = vld [vmem:[#allocation4 + $0x8] sm:$0xff]
    %v45 = vld [vmem:[#allocation4 + $0x10] sm:$0xff]
    %v46 = vld [vmem:[#allocation4 + $0x18] sm:$0xff]
    %v47 = vmul.f32 %v39, %v39
    %v48 = vmul.f32 %v40, %v40
    %v49 = vmul.f32 %v41, %v41
    %v50 = vmul.f32 %v42, %v42
    %51 = vadd.xlane.f32.xlu0 %v47
    %v52 = vpop.xlane.xlu0 %51
    %53 = vadd.xlane.f32.xlu0 %v48
    %v54 = vpop.xlane.xlu0 %53
    %55 = vadd.xlane.f32.xlu0 %v49
    %v56 = vpop.xlane.xlu0 %55
    %57 = vadd.xlane.f32.xlu0 %v50
    %v58 = vpop.xlane.xlu0 %57
    %v59 = vrsqrt.pop %v52
    %v60 = vrsqrt.pop %v54
    %v61 = vrsqrt.pop %v56
    %v62 = vrsqrt.pop %v58
    %v63 = vmul.f32 %v59, 1.4142135
    %v64 = vmul.f32 %v60, 1.4142135
    %v65 = vmul.f32 %v61, 1.4142135
    %v66 = vmul.f32 %v62, 1.4142135
    %v67 = vmul.f32 %v39, %v63
    %v68 = vmul.f32 %v40, %v64
    %v69 = vmul.f32 %v41, %v65
    %v70 = vmul.f32 %v42, %v66
    %v71 = vmul.f32 %v43, %v43
    %v72 = vmul.f32 %v44, %v44
    %v73 = vmul.f32 %v45, %v45
    %v74 = vmul.f32 %v46, %v46
    %75 = vadd.xlane.f32.xlu0 %v71
    %v76 = vpop.xlane.xlu0 %75
    %77 = vadd.xlane.f32.xlu0 %v72
    %v78 = vpop.xlane.xlu0 %77
    %79 = vadd.xlane.f32.xlu0 %v73
    %v80 = vpop.xlane.xlu0 %79
    %81 = vadd.xlane.f32.xlu0 %v74
    %v82 = vpop.xlane.xlu0 %81
    %v83 = vrsqrt.pop %v76
    %v84 = vrsqrt.pop %v78
    %v85 = vrsqrt.pop %v80
    %v86 = vrsqrt.pop %v82
    %v87 = vmul.f32 %v83, 1.4142135
    %v88 = vmul.f32 %v84, 1.4142135
    %v89 = vmul.f32 %v85, 1.4142135
    %v90 = vmul.f32 %v86, 1.4142135
    %v91 = vmul.f32 %v43, %v87
    %v92 = vmul.f32 %v44, %v88
    %v93 = vmul.f32 %v45, %v89
    %v94 = vmul.f32 %v46, %v90
    %95 = vmatprep.subr.mxu0 0.0
    %96 = vmatpush1.xpose.msra.mxu0 0.0
    %97 = vmatprep.subr.mxu0 0.0
    %98 = vmatpush1.xpose.msra.mxu0 0.0
    %99 = vmatprep.subr.mxu0 0.0
    %100 = vmatpush1.xpose.msra.mxu0 0.0
    %101 = vmatprep.subr.mxu0 0.0
    %102 = vmatpush1.xpose.msra.mxu0 0.0
    %103 = vmatprep.subr.mxu0 0.0
    %104 = vmatpush1.xpose.msra.mxu0 0.0
    %105 = vmatprep.subr.mxu0 0.0
    %106 = vmatpush1.xpose.msra.mxu0 0.0
    %107 = vmatprep.subr.mxu0 0.0
    %108 = vmatpush1.xpose.msra.mxu0 0.0
    %109 = vmatprep.subr.mxu0 0.0
    %110 = vmatpush1.xpose.msra.mxu0 0.0
    %111 = vmatprep.subr.mxu0 0.0
    %112 = vmatpush1.xpose.msra.mxu0 0.0
    %113 = vmatprep.subr.mxu0 0.0
    %114 = vmatpush1.xpose.msra.mxu0 0.0
    %115 = vmatprep.subr.mxu0 0.0
    %116 = vmatpush1.xpose.msra.mxu0 0.0
    %117 = vmatprep.subr.mxu0 0.0
    %118 = vmatpush1.xpose.msra.mxu0 0.0
    %119 = vmatprep.subr.mxu0 0.0
    %120 = vmatpush1.xpose.msra.mxu0 %v94
    %121 = vmatprep.subr.mxu0 0.0
    %122 = vmatpush1.xpose.msra.mxu0 %v93
    %123 = vmatprep.subr.mxu0 0.0
    %124 = vmatpush1.xpose.msra.mxu0 %v92
    %125 = vmatprep.subr.mxu0 0.0
    %126 = vmatpush1.xpose.msra.mxu0 %v91
    %127 = vmatprep.subr.mxu0 0.0
    %128 = vmatpush2.xpose.msra.mxu0 0.0
    %129 = vmatprep.subr.mxu0 0.0
    %130 = vmatpush2.xpose.msra.mxu0 0.0
    %131 = vmatprep.subr.mxu0 0.0
    %132 = vmatpush2.xpose.msra.mxu0 0.0
    %133 = vmatprep.subr.mxu0 0.0
    %134 = vmatpush2.xpose.msra.mxu0 0.0
    %135 = vmatprep.subr.mxu0 0.0
    %136 = vmatpush2.xpose.msra.mxu0 0.0
    %137 = vmatprep.subr.mxu0 0.0
    %138 = vmatpush2.xpose.msra.mxu0 0.0
    %139 = vmatprep.subr.mxu0 0.0
    %140 = vmatpush2.xpose.msra.mxu0 0.0
    %141 = vmatprep.subr.mxu0 0.0
    %142 = vmatpush2.xpose.msra.mxu0 0.0
    %143 = vmatprep.subr.mxu0 0.0
    %144 = vmatpush2.xpose.msra.mxu0 0.0
    %145 = vmatprep.subr.mxu0 0.0
    %146 = vmatpush2.xpose.msra.mxu0 0.0
    %147 = vmatprep.subr.mxu0 0.0
    %148 = vmatpush2.xpose.msra.mxu0 0.0
    %149 = vmatprep.subr.mxu0 0.0
    %150 = vmatpush2.xpose.msra.mxu0 0.0
    %151 = vmatprep.subr.mxu0 0.0
    %152 = vmatpush2.xpose.msra.mxu0 0.0
    %153 = vmatprep.subr.mxu0 0.0
    %154 = vmatpush2.xpose.msra.mxu0 0.0
    %155 = vmatprep.subr.mxu0 0.0
    %156 = vmatpush2.xpose.msra.mxu0 0.0
    %157 = vmatprep.subr.mxu0 0.0
    %158 = vmatpush2.xpose.msra.mxu0 0.0
    %159 = vmatprep.mubr.f32.mxu0 0.0
    %160 = vmatmul.mubr.f32.gmra.mxu0 %v67
    %v161 = vpop.f32.mrf.mxu0
    %v162 = vadd.f32 0.0, %v161
    %v163 = vpop.f32.mrf.mxu0
    %164 = vmatprep.mubr.f32.mxu0 0.0
    %165 = vmatmul.mubr.f32.gmra.mxu0 %v68
    %v166 = vpop.f32.mrf.mxu0
    %v167 = vadd.f32 0.0, %v166
    %v168 = vpop.f32.mrf.mxu0
    %169 = vmatprep.mubr.f32.mxu0 0.0
    %170 = vmatmul.mubr.f32.gmra.mxu0 %v69
    %v171 = vpop.f32.mrf.mxu0
    %v172 = vadd.f32 0.0, %v171
    %v173 = vpop.f32.mrf.mxu0
    %174 = vmatprep.mubr.f32.mxu0 0.0
    %175 = vmatmul.mubr.f32.gmra.mxu0 %v70
    %v176 = vpop.f32.mrf.mxu0
    %v177 = vadd.f32 0.0, %v176
    %v178 = vpop.f32.mrf.mxu0
    %179 = vdwg.mxu0
    %v180 = vmul.f32 %v162, 1.442695
    %v181 = vpow.pop %v180
    %v182 = vmul.f32 %v167, 1.442695
    %v183 = vpow.pop %v182
    %v184 = vmul.f32 %v172, 1.442695
    %v185 = vpow.pop %v184
    %v186 = vmul.f32 %v177, 1.442695
    %v187 = vpow.pop %v186
    %v188 = vmul.f32 %v67, %v67
    %v189 = vmul.f32 %v68, %v68
    %v190 = vmul.f32 %v69, %v69
    %v191 = vmul.f32 %v70, %v70
    %192 = vadd.xlane.f32.xlu0 %v188
    %v193 = vpop.xlane.xlu0 %192
    %194 = vadd.xlane.f32.xlu0 %v189
    %v195 = vpop.xlane.xlu0 %194
    %196 = vadd.xlane.f32.xlu0 %v190
    %v197 = vpop.xlane.xlu0 %196
    %198 = vadd.xlane.f32.xlu0 %v191
    %v199 = vpop.xlane.xlu0 %198
    %vm200 = vcmask 261120
    %v201 = vsel %vm200, %v181, 0.0
    %202 = vadd.xlane.f32.xlu0 %v201
    %v203 = vpop.xlane.xlu0 %202
    %v204 = vsel %vm200, %v183, 0.0
    %205 = vadd.xlane.f32.xlu0 %v204
    %v206 = vpop.xlane.xlu0 %205
    %v207 = vsel %vm200, %v185, 0.0
    %208 = vadd.xlane.f32.xlu0 %v207
    %v209 = vpop.xlane.xlu0 %208
    %v210 = vsel %vm200, %v187, 0.0
    %211 = vadd.xlane.f32.xlu0 %v210
    %v212 = vpop.xlane.xlu0 %211
    %v213 = vmul.f32 %v193, 1.442695
    %v214 = vpow.pop %v213
    %v215 = vmul.f32 %v195, 1.442695
    %v216 = vpow.pop %v215
    %v217 = vmul.f32 %v197, 1.442695
    %v218 = vpow.pop %v217
    %v219 = vmul.f32 %v199, 1.442695
    %v220 = vpow.pop %v219
    %v221 = vsub.f32 %v203, %v214
    %v222 = vsub.f32 %v206, %v216
    %v223 = vsub.f32 %v209, %v218
    %v224 = vsub.f32 %v212, %v220
    %v225 = vrot.slane %v67, 1
    %v226 = vrot.slane %v68, 1
    %v227 = vrot.slane %v69, 1
    %v228 = vrot.slane %v70, 1
    %v229 = vlaneseq
    %v230 = vshrl.u32 %v229, 7
    %vm231 = vcmp.lt.s32.totalorder %v230, 7
    %v232 = vsel %vm231, %v227, %v228
    %v233 = vsel %vm231, %v226, %v227
    %v234 = vsel %vm231, %v225, %v226
    %v235 = vsel %vm231, %v228, %v225
    %v236 = vrot.slane %v67, 7
    %v237 = vrot.slane %v68, 7
    %v238 = vrot.slane %v69, 7
    %v239 = vrot.slane %v70, 7
    %vm240 = vcmp.lt.s32.totalorder %v230, 1
    %v241 = vsel %vm240, %v238, %v239
    %v242 = vsel %vm240, %v237, %v238
    %v243 = vsel %vm240, %v236, %v237
    %v244 = vsel %vm240, %v239, %v236
    %v245 = vadd.s32 %v230, 8
    %v246 = vadd.s32 %v230, 16
    %v247 = vadd.s32 %v230, 24
    %vm248 = vcmp.lt.s32.totalorder %v230, 0
    %v249 = vsub.s32 0, %v230
    %v250 = vsel %vm248, %v249, %v230
    %v251 = vshrl.u32 %v250, 1
    %v252 = vand.u32 %v250, 1
    %v253 = vsub.s32 0, %v252
    %v254 = vsel %vm248, %v253, %v252
    %vm255 = vcmp.lt.s32.totalorder %v245, 0
    %v256 = vsub.s32 0, %v245
    %v257 = vsel %vm255, %v256, %v245
    %v258 = vshrl.u32 %v257, 1
    %v259 = vand.u32 %v257, 1
    %v260 = vsub.s32 0, %v259
    %v261 = vsel %vm255, %v260, %v259
    %vm262 = vcmp.lt.s32.totalorder %v246, 0
    %v263 = vsub.s32 0, %v246
    %v264 = vsel %vm262, %v263, %v246
    %v265 = vshrl.u32 %v264, 1
    %v266 = vand.u32 %v264, 1
    %v267 = vsub.s32 0, %v266
    %v268 = vsel %vm262, %v267, %v266
    %vm269 = vcmp.lt.s32.totalorder %v247, 0
    %v270 = vsub.s32 0, %v247
    %v271 = vsel %vm269, %v270, %v247
    %v272 = vshrl.u32 %v271, 1
    %v273 = vand.u32 %v271, 1
    %v274 = vsub.s32 0, %v273
    %v275 = vsel %vm269, %v274, %v273
    %vm276 = vcmp.ne.s32.totalorder %v254, 0
    %vm277 = vcmp.ne.s32.totalorder %v261, 0
    %vm278 = vcmp.ne.s32.totalorder %v268, 0
    %vm279 = vcmp.ne.s32.totalorder %v275, 0
    %vm280 = vcmp.lt.s32.totalorder %v254, 0
    %vm281 = vcmp.lt.s32.totalorder %v261, 0
    %vm282 = vcmp.lt.s32.totalorder %v268, 0
    %vm283 = vcmp.lt.s32.totalorder %v275, 0
    %vm284 = vmand %vm280, %vm276
    %vm285 = vmand %vm281, %vm277
    %vm286 = vmand %vm282, %vm278
    %vm287 = vmand %vm283, %vm279
    %v288 = vadd.s32 %v254, 2
    %v289 = vadd.s32 %v261, 2
    %v290 = vadd.s32 %v268, 2
    %v291 = vadd.s32 %v275, 2
    %v292 = vsel %vm284, %v288, %v254
    %v293 = vsel %vm285, %v289, %v261
    %v294 = vsel %vm286, %v290, %v268
    %v295 = vsel %vm287, %v291, %v275
    %vm296 = vcmp.eq.s32.totalorder %v292, 0
    %vm297 = vcmp.eq.s32.totalorder %v293, 0
    %vm298 = vcmp.eq.s32.totalorder %v294, 0
    %vm299 = vcmp.eq.s32.totalorder %v295, 0
    %v300 = vsel %vm296, 1, 0
    %v301 = vsel %vm297, 1, 0
    %v302 = vsel %vm298, 1, 0
    %v303 = vsel %vm299, 1, 0
    %vm304 = vcmp.eq.s32.totalorder %v300, 1
    %vm305 = vcmp.eq.s32.totalorder %v301, 1
    %vm306 = vcmp.eq.s32.totalorder %v302, 1
    %vm307 = vcmp.eq.s32.totalorder %v303, 1
    %v308 = vsel %vm304, %v234, %v244
    %v309 = vsel %vm305, %v233, %v243
    %v310 = vsel %vm306, %v232, %v242
    %v311 = vsel %vm307, %v235, %v241
    %v312 = vmul.f32 %v67, %v308
    %v313 = vmul.f32 %v68, %v309
    %v314 = vmul.f32 %v69, %v310
    %v315 = vmul.f32 %v70, %v311
    %316 = vadd.xlane.f32.xlu0 %v312
    %v317 = vpop.xlane.xlu0 %316
    %318 = vadd.xlane.f32.xlu0 %v313
    %v319 = vpop.xlane.xlu0 %318
    %320 = vadd.xlane.f32.xlu0 %v314
    %v321 = vpop.xlane.xlu0 %320
    %322 = vadd.xlane.f32.xlu0 %v315
    %v323 = vpop.xlane.xlu0 %322
    %v324 = vlog2.pop %v221
    %v325 = vmul.f32 %v324, 0.6931472
    %v326 = vlog2.pop %v222
    %v327 = vmul.f32 %v326, 0.6931472
    %v328 = vlog2.pop %v223
    %v329 = vmul.f32 %v328, 0.6931472
    %v330 = vlog2.pop %v224
    %v331 = vmul.f32 %v330, 0.6931472
    %v332 = vsub.f32 %v325, %v317
    %v333 = vsub.f32 %v327, %v319
    %v334 = vsub.f32 %v329, %v321
    %v335 = vsub.f32 %v331, %v323
    %vm336 = vcmask 7168
    %337 = vst.msk [vmem:[%s2] sm:$0xff] %vm336, %v332
    %338 = vst.msk [vmem:[%s2 + $0x8] sm:$0xff] %vm336, %v333
    %339 = vst.msk [vmem:[%s2 + $0x10] sm:$0xff] %vm336, %v334
    %340 = vst.msk [vmem:[%s2 + $0x18] sm:$0xff] %vm336, %v335
    // Predicated region
    $region18: #{tpu_custom_call.1} parent=1 // pred_check
      _
    $region19: #{tpu_custom_call.1} parent=1 // pred_check_branch
      %342 = sbr.rel (0) target = $region21
    $region20: #{tpu_custom_call.1} parent=1 // pred_region
      _
    $region21: #{tpu_custom_call.1} parent=1 // pred_fallthru
      _
    // Predicated region
    $region22: #{tpu_custom_call.1} parent=1 // pred_check
      _
    $region23: #{tpu_custom_call.1} parent=1 // pred_check_branch
      %344 = sbr.rel (0) target = $region25
    $region24: #{tpu_custom_call.1} parent=1 // pred_region
      _
    $region25: #{tpu_custom_call.1} parent=1 // pred_fallthru
      _
    %345 = vsyncpa [#allocation3], 1
    %346 = vsyncpa [#allocation5], 1

</llo_original>
